<compile_context>
chip_gen: v7x
topology: tpu7x:2x2x1
jax: 0.10.0
libtpu: 0.0.40
codegen_flags: <defaults>
</compile_context>

<pallas_src>
import math

import jax
import jax.numpy as jnp
from jax import lax
from jax.experimental import pallas as pl
from jax.experimental.pallas import tpu as pltpu


def _round_up(v, m):
    return ((v + m - 1) // m) * m


def gcn_layer_kernel(x_ref, w_ref, b_ref,            # [Np,Fi], [Fi,Fo], [1,Fo]   (VMEM)
                     row_ref, col_ref, ew_ref,       # [1,Eb], [Eb,1], [Eb,1]     (VMEM)
                     out_ref,                        # [Np,Fo]                    (VMEM)
                     support_ref, acc_ref):          # VMEM scratch [Np,Fo] f32
    n_pad = support_ref.shape[0]
    eb = row_ref.shape[1]

    # --- once, at the first edge block: linear + accumulator init ---
    @pl.when(pl.program_id(0) == 0)
    def _init():
        support_ref[...] = (
            jnp.dot(x_ref[...], w_ref[...], preferred_element_type=jnp.float32)
            + b_ref[...]
        )
        acc_ref[...] = jnp.zeros_like(acc_ref)

    # --- blocked SpMM via one-hot matmuls on the MXU ---
    col = col_ref[...]                                   # [Eb, 1] int32
    ew = ew_ref[...]                                     # [Eb, 1] f32 (0 for padded edges)
    rowv = row_ref[...]                                  # [1, Eb] int32

    gather_oh = (lax.broadcasted_iota(jnp.int32, (eb, n_pad), 1) == col
                 ).astype(jnp.float32)                   # [Eb, Np]
    gathered = jnp.dot(gather_oh, support_ref[...],
                       preferred_element_type=jnp.float32)   # [Eb, Fo]
    msgs = ew * gathered                                 # [Eb, Fo]

    scatter_oh = (lax.broadcasted_iota(jnp.int32, (n_pad, eb), 0) == rowv
                  ).astype(jnp.float32)                  # [Np, Eb]
    acc_ref[...] += jnp.dot(scatter_oh, msgs,
                            preferred_element_type=jnp.float32)

    # --- once, at the last edge block: fused relu + single lane-dense store ---
    @pl.when(pl.program_id(0) == pl.num_programs(0) - 1)
    def _finalize():
        out_ref[...] = jnp.maximum(acc_ref[...], 0.0)


def gcn_layer_st(x, edge_index, edge_weight, weight, bias, *, edge_block=128):
    """x: [N, F_in] f32, edge_index: (row, col) int32[E], edge_weight: f32[E],
    weight: [F_out, F_in] f32, bias: [F_out] f32  ->  [N, F_out] f32."""
    n, f_in = x.shape
    f_out = weight.shape[0]
    row, col = edge_index
    e = row.shape[0]

    # Pad feature dims to 128 lanes (lane-dense stores / MXU-friendly),
    # nodes to the 8-sublane granule, edges to the edge-block size.
    n_pad = _round_up(n, 8)
    f_in_pad = _round_up(f_in, 128)
    f_out_pad = _round_up(f_out, 128)
    e_pad = _round_up(max(e, 1), edge_block)

    # NOTE: keep operands f32 (f32 accumulation everywhere) to preserve the
    # 1e-4 tolerance vs the f32 reference; one-hot matrices are exact anyway.
    x_p = jnp.zeros((n_pad, f_in_pad), jnp.float32).at[:n, :f_in].set(
        x.astype(jnp.float32))
    w_t_p = jnp.zeros((f_in_pad, f_out_pad), jnp.float32).at[:f_in, :f_out].set(
        weight.T.astype(jnp.float32))
    b_p = jnp.zeros((1, f_out_pad), jnp.float32).at[0, :f_out].set(
        bias.astype(jnp.float32))

    # Padded edges get weight 0 / indices 0 -> exactly zero contribution.
    row_p = jnp.zeros((1, e_pad), jnp.int32).at[0, :e].set(row.astype(jnp.int32))
    col_p = jnp.zeros((e_pad, 1), jnp.int32).at[:e, 0].set(col.astype(jnp.int32))
    ew_p = jnp.zeros((e_pad, 1), jnp.float32).at[:e, 0].set(
        edge_weight.astype(jnp.float32))

    n_edge_blocks = e_pad // edge_block

    grid_spec = pltpu.PrefetchScalarGridSpec(
        num_scalar_prefetch=0,
        grid=(n_edge_blocks,),
        in_specs=[
            pl.BlockSpec((n_pad, f_in_pad), lambda i: (0, 0)),      # x
            pl.BlockSpec((f_in_pad, f_out_pad), lambda i: (0, 0)),  # W^T
            pl.BlockSpec((1, f_out_pad), lambda i: (0, 0)),         # bias
            pl.BlockSpec((1, edge_block), lambda i: (0, i)),        # row ids
            pl.BlockSpec((edge_block, 1), lambda i: (i, 0)),        # col ids
            pl.BlockSpec((edge_block, 1), lambda i: (i, 0)),        # edge weights
        ],
        out_specs=pl.BlockSpec((n_pad, f_out_pad), lambda i: (0, 0)),
        scratch_shapes=[
            pltpu.VMEM((n_pad, f_out_pad), jnp.float32),   # support
            pltpu.VMEM((n_pad, f_out_pad), jnp.float32),   # accumulator
        ],
    )

    out_p = pl.pallas_call(
        gcn_layer_kernel,
        out_shape=jax.ShapeDtypeStruct((n_pad, f_out_pad), jnp.float32),
        grid_spec=grid_spec,
        compiler_params=pltpu.CompilerParams(
            dimension_semantics=("arbitrary",),
            vmem_limit_bytes=64 * 1024 * 1024,
        ),
    )(x_p, w_t_p, b_p, row_p, col_p, ew_p)

    return out_p[:n, :f_out]


if __name__ == "__main__":
    N, F_IN, F_OUT, E = 64, 16, 32, 300   # E > edge_block -> multi-block path exercised

    key = jax.random.PRNGKey(0)
    kx, kw, kb, kr, kc, ke = jax.random.split(key, 6)

    # Node features.
    x = jax.random.normal(kx, (N, F_IN), jnp.float32)

    # Deterministic parameter init mirroring GCNLayerST.reset_parameters():
    #   weight ~ U(-1/sqrt(out_features), 1/sqrt(out_features))
    #   bias   ~ default nn.Linear init  U(-1/sqrt(in_features), 1/sqrt(in_features))
    stdv = 1.0 / math.sqrt(F_OUT)
    weight = jax.random.uniform(kw, (F_OUT, F_IN), jnp.float32, -stdv, stdv)
    b_bound = 1.0 / math.sqrt(F_IN)
    bias = jax.random.uniform(kb, (F_OUT,), jnp.float32, -b_bound, b_bound)

    # Random COO graph.
    row = jax.random.randint(kr, (E,), 0, N, jnp.int32)
    col = jax.random.randint(kc, (E,), 0, N, jnp.int32)
    edge_weight = jax.random.uniform(ke, (E,), jnp.float32, 0.1, 1.0)

    out = gcn_layer_st(x, (row, col), edge_weight, weight, bias)
    out = jax.block_until_ready(out)

    # Pure-JAX reference for correctness.
    support = x @ weight.T + bias
    msgs = edge_weight[:, None] * support[col]
    ref = jnp.zeros((N, F_OUT), jnp.float32).at[row].add(msgs)
    ref = jnp.maximum(ref, 0.0)
    assert jnp.allclose(out, ref, atol=1e-4, rtol=1e-4), "mismatch vs reference"

    print("KERNEL_OK")
</pallas_src>

<mosaic_0001>
module attributes {stable_mosaic.version = 11 : i64} {
  func.func @gcn_layer_kernel(%arg0: i32, %arg1: memref<64x128xf32, #tpu.memory_space<vmem>>, %arg2: memref<128x128xf32, #tpu.memory_space<vmem>>, %arg3: memref<1x128xf32, #tpu.memory_space<vmem>>, %arg4: memref<1x128xi32, #tpu.memory_space<vmem>>, %arg5: memref<128x1xi32, #tpu.memory_space<vmem>>, %arg6: memref<128x1xf32, #tpu.memory_space<vmem>>, %arg7: memref<64x128xf32, #tpu.memory_space<vmem>>, %arg8: memref<64x128xf32, #tpu.memory_space<vmem>>, %arg9: memref<64x128xf32, #tpu.memory_space<vmem>>) attributes {dimension_semantics = [#tpu.dimension_semantics<arbitrary>], iteration_bounds = array<i64: 3>, scalar_prefetch = 0 : i64, scratch_operands = 2 : i64, tpu.core_type = #tpu.core_type<tc>, window_params = [{pipeline_mode = #tpu.pipeline_mode<synchronous>, transform_indices = @transform_0, window_bounds = array<i64: 64, 128>}, {pipeline_mode = #tpu.pipeline_mode<synchronous>, transform_indices = @transform_1, window_bounds = array<i64: 128, 128>}, {pipeline_mode = #tpu.pipeline_mode<synchronous>, transform_indices = @transform_2, window_bounds = array<i64: 1, 128>}, {transform_indices = @transform_3, window_bounds = array<i64: 1, 128>}, {transform_indices = @transform_4, window_bounds = array<i64: 128, 1>}, {transform_indices = @transform_5, window_bounds = array<i64: 128, 1>}, {pipeline_mode = #tpu.pipeline_mode<synchronous>, transform_indices = @transform_6, window_bounds = array<i64: 64, 128>}]} {
    %c0_i32 = arith.constant 0 : i32
    %0 = arith.cmpi eq, %arg0, %c0_i32 : i32
    %1 = arith.extui %0 : i1 to i32
    %c0_i32_0 = arith.constant 0 : i32
    %2 = arith.cmpi ne, %1, %c0_i32_0 : i32
    scf.if %2 {
      %c0_14 = arith.constant 0 : index
      %c0_15 = arith.constant 0 : index
      %27 = vector.load %arg1[%c0_14, %c0_15] : memref<64x128xf32, #tpu.memory_space<vmem>>, vector<64x128xf32>
      %c0_16 = arith.constant 0 : index
      %c0_17 = arith.constant 0 : index
      %28 = vector.load %arg2[%c0_16, %c0_17] : memref<128x128xf32, #tpu.memory_space<vmem>>, vector<128x128xf32>
      %cst_18 = arith.constant dense<0.000000e+00> : vector<64x128xf32>
      %29 = tpu.matmul %27, %28, %cst_18 {dimension_numbers = #tpu.dot_dimension_numbers<[1], [0], [0], [1], [0, 0, 1, 1], [], []>} : vector<64x128xf32>, vector<128x128xf32>, vector<64x128xf32> -> vector<64x128xf32>
      %c0_19 = arith.constant 0 : index
      %c0_20 = arith.constant 0 : index
      %30 = vector.load %arg3[%c0_19, %c0_20] : memref<1x128xf32, #tpu.memory_space<vmem>>, vector<1x128xf32>
      %31 = vector.broadcast %30 : vector<1x128xf32> to vector<64x128xf32>
      %32 = arith.addf %29, %31 : vector<64x128xf32>
      %c0_21 = arith.constant 0 : index
      %c0_22 = arith.constant 0 : index
      %33 = vector.load %arg8[%c0_21, %c0_22] : memref<64x128xf32, #tpu.memory_space<vmem>>, vector<64x128xf32>
      tpu.vector_store %arg8[%c0_21, %c0_22], %32 {strides = array<i32>} : memref<64x128xf32, #tpu.memory_space<vmem>>, vector<64x128xf32>,
      %cst_23 = arith.constant 0.000000e+00 : f32
      %34 = vector.broadcast %cst_23 : f32 to vector<64x128xf32>
      %c0_24 = arith.constant 0 : index
      %c0_25 = arith.constant 0 : index
      %35 = vector.load %arg9[%c0_24, %c0_25] : memref<64x128xf32, #tpu.memory_space<vmem>>, vector<64x128xf32>
      tpu.vector_store %arg9[%c0_24, %c0_25], %34 {strides = array<i32>} : memref<64x128xf32, #tpu.memory_space<vmem>>, vector<64x128xf32>,
    } else {
    }
    %c0 = arith.constant 0 : index
    %c0_1 = arith.constant 0 : index
    %3 = vector.load %arg5[%c0, %c0_1] : memref<128x1xi32, #tpu.memory_space<vmem>>, vector<128x1xi32>
    %c0_2 = arith.constant 0 : index
    %c0_3 = arith.constant 0 : index
    %4 = vector.load %arg6[%c0_2, %c0_3] : memref<128x1xf32, #tpu.memory_space<vmem>>, vector<128x1xf32>
    %c0_4 = arith.constant 0 : index
    %c0_5 = arith.constant 0 : index
    %5 = vector.load %arg4[%c0_4, %c0_5] : memref<1x128xi32, #tpu.memory_space<vmem>>, vector<1x128xi32>
    %6 = tpu.iota {dimensions = array<i32: 1>} : vector<128x64xi32>
    %7 = vector.broadcast %3 : vector<128x1xi32> to vector<128x64xi32>
    %8 = arith.cmpi eq, %6, %7 : vector<128x64xi32>
    %9 = arith.extui %8 : vector<128x64xi1> to vector<128x64xi32>
    %10 = arith.sitofp %9 : vector<128x64xi32> to vector<128x64xf32>
    %c0_6 = arith.constant 0 : index
    %c0_7 = arith.constant 0 : index
    %11 = vector.load %arg8[%c0_6, %c0_7] : memref<64x128xf32, #tpu.memory_space<vmem>>, vector<64x128xf32>
    %cst = arith.constant dense<0.000000e+00> : vector<128x128xf32>
    %12 = tpu.matmul %10, %11, %cst {dimension_numbers = #tpu.dot_dimension_numbers<[1], [0], [0], [1], [0, 0, 1, 1], [], []>} : vector<128x64xf32>, vector<64x128xf32>, vector<128x128xf32> -> vector<128x128xf32>
    %13 = vector.broadcast %4 : vector<128x1xf32> to vector<128x128xf32>
    %14 = arith.mulf %13, %12 : vector<128x128xf32>
    %15 = tpu.iota {dimensions = array<i32: 0>} : vector<64x128xi32>
    %16 = vector.broadcast %5 : vector<1x128xi32> to vector<64x128xi32>
    %17 = arith.cmpi eq, %15, %16 : vector<64x128xi32>
    %18 = arith.extui %17 : vector<64x128xi1> to vector<64x128xi32>
    %19 = arith.sitofp %18 : vector<64x128xi32> to vector<64x128xf32>
    %c0_8 = arith.constant 0 : index
    %c0_9 = arith.constant 0 : index
    %20 = vector.load %arg9[%c0_8, %c0_9] : memref<64x128xf32, #tpu.memory_space<vmem>>, vector<64x128xf32>
    %cst_10 = arith.constant dense<0.000000e+00> : vector<64x128xf32>
    %21 = tpu.matmul %19, %14, %cst_10 {dimension_numbers = #tpu.dot_dimension_numbers<[1], [0], [0], [1], [0, 0, 1, 1], [], []>} : vector<64x128xf32>, vector<128x128xf32>, vector<64x128xf32> -> vector<64x128xf32>
    %22 = arith.addf %20, %21 : vector<64x128xf32>
    %c0_11 = arith.constant 0 : index
    %c0_12 = arith.constant 0 : index
    %23 = vector.load %arg9[%c0_11, %c0_12] : memref<64x128xf32, #tpu.memory_space<vmem>>, vector<64x128xf32>
    tpu.vector_store %arg9[%c0_11, %c0_12], %22 {strides = array<i32>} : memref<64x128xf32, #tpu.memory_space<vmem>>, vector<64x128xf32>,
    %c2_i32 = arith.constant 2 : i32
    %24 = arith.cmpi eq, %arg0, %c2_i32 : i32
    %25 = arith.extui %24 : i1 to i32
    %c0_i32_13 = arith.constant 0 : i32
    %26 = arith.cmpi ne, %25, %c0_i32_13 : i32
    scf.if %26 {
      %c0_14 = arith.constant 0 : index
      %c0_15 = arith.constant 0 : index
      %27 = vector.load %arg9[%c0_14, %c0_15] : memref<64x128xf32, #tpu.memory_space<vmem>>, vector<64x128xf32>
      %cst_16 = arith.constant 0.000000e+00 : f32
      %28 = vector.broadcast %cst_16 : f32 to vector<64x128xf32>
      %29 = arith.maximumf %27, %28 : vector<64x128xf32>
      %c0_17 = arith.constant 0 : index
      %c0_18 = arith.constant 0 : index
      %30 = vector.load %arg7[%c0_17, %c0_18] : memref<64x128xf32, #tpu.memory_space<vmem>>, vector<64x128xf32>
      tpu.vector_store %arg7[%c0_17, %c0_18], %29 {strides = array<i32>} : memref<64x128xf32, #tpu.memory_space<vmem>>, vector<64x128xf32>,
    } else {
    }
    return
  }
  func.func @transform_0(%arg0: i32) -> (i32, i32) {
    %c0_i32 = arith.constant 0 : i32
    %c0_i32_0 = arith.constant 0 : i32
    %c0_i32_1 = arith.constant 0 : i32
    return %c0_i32, %c0_i32_0 : i32, i32
  }
  func.func @transform_1(%arg0: i32) -> (i32, i32) {
    %c0_i32 = arith.constant 0 : i32
    %c0_i32_0 = arith.constant 0 : i32
    %c0_i32_1 = arith.constant 0 : i32
    return %c0_i32, %c0_i32_0 : i32, i32
  }
  func.func @transform_2(%arg0: i32) -> (i32, i32) {
    %c0_i32 = arith.constant 0 : i32
    %c0_i32_0 = arith.constant 0 : i32
    %c0_i32_1 = arith.constant 0 : i32
    return %c0_i32, %c0_i32_0 : i32, i32
  }
  func.func @transform_3(%arg0: i32) -> (i32, i32) {
    %c0_i32 = arith.constant 0 : i32
    %c0_i32_0 = arith.constant 0 : i32
    return %c0_i32, %arg0 : i32, i32
  }
  func.func @transform_4(%arg0: i32) -> (i32, i32) {
    %c0_i32 = arith.constant 0 : i32
    %c0_i32_0 = arith.constant 0 : i32
    return %arg0, %c0_i32 : i32, i32
  }
  func.func @transform_5(%arg0: i32) -> (i32, i32) {
    %c0_i32 = arith.constant 0 : i32
    %c0_i32_0 = arith.constant 0 : i32
    return %arg0, %c0_i32 : i32, i32
  }
  func.func @transform_6(%arg0: i32) -> (i32, i32) {
    %c0_i32 = arith.constant 0 : i32
    %c0_i32_0 = arith.constant 0 : i32
    %c0_i32_1 = arith.constant 0 : i32
    return %c0_i32, %c0_i32_0 : i32, i32
  }
}

</mosaic_0001>

<llo_original>
// kernel: tpu_custom_call.1
$region0: #{tpu_custom_call.1}
  #allocation0 [shape = 'u32[]', space=smem, size = 0x4, offset = 0x4, fixed_abs, tag = 'smem constant byte address 0x4 - core index']
  #allocation1 [shape = 'u32[144,128]{1,0:T(1,128)}', space=vmem, size = 0x12000, scoped, tag = 'internal scratch']
  #allocation2 [shape = 'f32[64,128]{1,0:T(8,128)}', space=vmem, size = 0x8000, scoped, tag = 'scratch operand']
  #allocation3 [shape = 'f32[64,128]{1,0:T(8,128)}', space=vmem, size = 0x8000, scoped, tag = 'scratch operand']
  %s0 = inlined_call_operand.hbm [shape: f32[64,128], index: 0, kind: input, shape index: {}]
  %s1 = inlined_call_operand.hbm [shape: f32[128,128], index: 1, kind: input, shape index: {}]
  %s2 = inlined_call_operand.hbm [shape: f32[1,128], index: 2, kind: input, shape index: {}]
  %s3 = inlined_call_operand.hbm [shape: s32[1,384], index: 3, kind: input, shape index: {}]
  %s4 = inlined_call_operand.hbm [shape: s32[384,1], index: 4, kind: input, shape index: {}]
  %s5 = inlined_call_operand.hbm [shape: f32[384,1], index: 5, kind: input, shape index: {}]
  %s6 = inlined_call_operand.hbm [shape: f32[64,128], index: 6, kind: output, shape index: {}]
  %s7 = sld [smem:[#allocation0]]
  $region89: #{tpu_custom_call.1} parent=0
    _
  %s9 = ssub.s32 1, %s7
  %s10 = scalar_select 0, %s9, %s7
  $region1: #{tpu_custom_call.1} parent=0
    #allocation4 [shape = 'u8[32768]{0}', space=vmem, size = 0x8000, scoped, tag = 'input window, operand 0, single buffered']
    #allocation5 [shape = 's32[2]{0}', space=sflag, size = 0x8, scoped, tag = 'scoped memory for tpu_custom_call.1']
    #allocation6 [shape = 's32[2]{0}', space=sflag, size = 0x8, scoped, tag = 'scoped memory for tpu_custom_call.1']
    #allocation7 [shape = 'u8[65536]{0}', space=vmem, size = 0x10000, scoped, tag = 'input window, operand 1, single buffered']
    #allocation8 [shape = 's32[1]{0}', space=sflag, size = 0x4, scoped, tag = 'scoped memory for tpu_custom_call.1']
    #allocation9 [shape = 'u8[512]{0}', space=vmem, size = 0x400, scoped, tag = 'input window, operand 2, single buffered']
    #allocation10 [shape = 'u8[1024]{0}', space=vmem, size = 0x400, scoped, tag = 'input window, operand 3']
    #allocation11 [shape = 's32[2]{0}', space=sflag, size = 0x8, scoped, tag = 'scoped memory for tpu_custom_call.1']
    #allocation12 [shape = 'u8[131072]{0}', space=vmem, size = 0x20000, scoped, tag = 'input window, operand 4']
    #allocation13 [shape = 'u8[131072]{0}', space=vmem, size = 0x20000, scoped, tag = 'input window, operand 5']
    #allocation14 [shape = 's32[2]{0}', space=sflag, size = 0x8, scoped, tag = 'scoped memory for tpu_custom_call.1']
    #allocation15 [shape = 'u8[32768]{0}', space=vmem, size = 0x8000, scoped, tag = 'output window, operand 0, single buffered']
    %11 = vsyncpa [#allocation5], 0
    %12 = vsyncpa [#allocation8], 0
    %13 = vsyncpa [#allocation11], 0
    %s14 = scalar_lea.sflag [#allocation11], 1
    %15 = vsyncpa %s14, 0
    %16 = vsyncpa [#allocation14], 0
    %s17 = scalar_lea.sflag [#allocation14], 1
    %18 = vsyncpa %s17, 0
    %19 = vsyncpa [#allocation6], 0
    loop: start=0, step=1, limit=5
    $region2: #{tpu_custom_call.1} parent=1 // loop_pre_header
      _
    $region3: #{tpu_custom_call.1} parent=1 // loop_header
      %s21 = sphi 0, %s25
      %p22 = scmp.ge.s32.totalorder %s21, 5
      %s29 = sphi 0, %s29
      %s31 = sphi 0, %s29
      %s32 = sphi 0, %s31
      %s46 = sphi 0, %s32
      %s50 = sphi 0, %s50
      %s52 = sphi 0, %s50
      %s53 = sphi 0, %s52
      %s67 = sphi 0, %s53
      %s71 = sphi 0, %s71
      %s73 = sphi 0, %s71
      %s74 = sphi 0, %s73
      %s88 = sphi 0, %s74
      %s94 = sphi 0, %s96
      %s97 = sphi 0, %s94
      %s98 = sphi 0, %s97
      %s114 = sphi 0, %s98
      %s120 = sphi 0, %s122
      %s123 = sphi 0, %s120
      %s124 = sphi 0, %s123
      %s140 = sphi 0, %s124
      %s146 = sphi 0, %s148
      %s149 = sphi 0, %s146
      %s150 = sphi 0, %s149
      %s166 = sphi 0, %s150
      %s170 = sphi 0, %s170
      %s172 = sphi 0, %s170
      %s173 = sphi 0, %s172
      %s187 = sphi 0, %s173
    $region4: #{tpu_custom_call.1} parent=1 // loop_header_branch
      %24 = sbr.rel (%p22) target = $region8
    $region5: #{tpu_custom_call.1} parent=1 // loop_body
      %s26 = ssub.s32 %s21, 1
      %s27 = ssub.s32 %s21, 2
      %s28 = sadd.s32 %s21, 1
      %s30 = sadd.s32 %s29, 1
      %p33 = scmp.eq.s32.totalorder %s21, 2
      %p34 = scmp.ne.s32.totalorder %s29, %s31
      %p35 = scmp.eq.s32.totalorder %s21, 0
      %p36 = por %p34, %p35
      %p37 = scmp.ne.s32.totalorder %s29, %s31
      %p38 = scmp.eq.s32.totalorder %s26, 2
      %p39 = por %p37, %p38
      %p40 = scmp.ne.s32.totalorder %s31, %s32
      %p41 = scmp.eq.s32.totalorder %s26, 0
      %p42 = por %p40, %p41
      %p43 = scmp.ne.s32.totalorder %s31, %s32
      %p44 = scmp.eq.s32.totalorder %s27, 2
      %p45 = por %p43, %p44
      %p47 = scmp.ne.s32.totalorder %s32, %s46
      %p48 = scmp.eq.s32.totalorder %s27, 0
      %p49 = por %p47, %p48
      %s51 = sadd.s32 %s50, 1
      %p54 = scmp.eq.s32.totalorder %s21, 2
      %p55 = scmp.ne.s32.totalorder %s50, %s52
      %p56 = scmp.eq.s32.totalorder %s21, 0
      %p57 = por %p55, %p56
      %p58 = scmp.ne.s32.totalorder %s50, %s52
      %p59 = scmp.eq.s32.totalorder %s26, 2
      %p60 = por %p58, %p59
      %p61 = scmp.ne.s32.totalorder %s52, %s53
      %p62 = scmp.eq.s32.totalorder %s26, 0
      %p63 = por %p61, %p62
      %p64 = scmp.ne.s32.totalorder %s52, %s53
      %p65 = scmp.eq.s32.totalorder %s27, 2
      %p66 = por %p64, %p65
      %p68 = scmp.ne.s32.totalorder %s53, %s67
      %p69 = scmp.eq.s32.totalorder %s27, 0
      %p70 = por %p68, %p69
      %s72 = sadd.s32 %s71, 1
      %p75 = scmp.eq.s32.totalorder %s21, 2
      %p76 = scmp.ne.s32.totalorder %s71, %s73
      %p77 = scmp.eq.s32.totalorder %s21, 0
      %p78 = por %p76, %p77
      %p79 = scmp.ne.s32.totalorder %s71, %s73
      %p80 = scmp.eq.s32.totalorder %s26, 2
      %p81 = por %p79, %p80
      %p82 = scmp.ne.s32.totalorder %s73, %s74
      %p83 = scmp.eq.s32.totalorder %s26, 0
      %p84 = por %p82, %p83
      %p85 = scmp.ne.s32.totalorder %s73, %s74
      %p86 = scmp.eq.s32.totalorder %s27, 2
      %p87 = por %p85, %p86
      %p89 = scmp.ne.s32.totalorder %s74, %s88
      %p90 = scmp.eq.s32.totalorder %s27, 0
      %p91 = por %p89, %p90
      %s92 = ssub.s32 %s21, %s28
      %p93 = scmp.eq.s32.totalorder %s92, 0
      %s95 = sadd.s32 %s94, 1
      %s96 = scalar_select %p93, %s94, %s95
      %p99 = pneg %p93
      %p100 = scmp.eq.s32.totalorder %s21, 2
      %p101 = por %p99, %p100
      %p102 = scmp.ne.s32.totalorder %s94, %s97
      %p103 = scmp.eq.s32.totalorder %s21, 0
      %p104 = por %p102, %p103
      %p105 = scmp.ne.s32.totalorder %s94, %s97
      %p106 = scmp.eq.s32.totalorder %s26, 2
      %p107 = por %p105, %p106
      %p108 = scmp.ne.s32.totalorder %s97, %s98
      %p109 = scmp.eq.s32.totalorder %s26, 0
      %p110 = por %p108, %p109
      %p111 = scmp.ne.s32.totalorder %s97, %s98
      %p112 = scmp.eq.s32.totalorder %s27, 2
      %p113 = por %p111, %p112
      %p115 = scmp.ne.s32.totalorder %s98, %s114
      %p116 = scmp.eq.s32.totalorder %s27, 0
      %p117 = por %p115, %p116
      %s118 = ssub.s32 %s21, %s28
      %p119 = scmp.eq.s32.totalorder %s118, 0
      %s121 = sadd.s32 %s120, 1
      %s122 = scalar_select %p119, %s120, %s121
      %p125 = pneg %p119
      %p126 = scmp.eq.s32.totalorder %s21, 2
      %p127 = por %p125, %p126
      %p128 = scmp.ne.s32.totalorder %s120, %s123
      %p129 = scmp.eq.s32.totalorder %s21, 0
      %p130 = por %p128, %p129
      %p131 = scmp.ne.s32.totalorder %s120, %s123
      %p132 = scmp.eq.s32.totalorder %s26, 2
      %p133 = por %p131, %p132
      %p134 = scmp.ne.s32.totalorder %s123, %s124
      %p135 = scmp.eq.s32.totalorder %s26, 0
      %p136 = por %p134, %p135
      %p137 = scmp.ne.s32.totalorder %s123, %s124
      %p138 = scmp.eq.s32.totalorder %s27, 2
      %p139 = por %p137, %p138
      %p141 = scmp.ne.s32.totalorder %s124, %s140
      %p142 = scmp.eq.s32.totalorder %s27, 0
      %p143 = por %p141, %p142
      %s144 = ssub.s32 %s21, %s28
      %p145 = scmp.eq.s32.totalorder %s144, 0
      %s147 = sadd.s32 %s146, 1
      %s148 = scalar_select %p145, %s146, %s147
      %p151 = pneg %p145
      %p152 = scmp.eq.s32.totalorder %s21, 2
      %p153 = por %p151, %p152
      %p154 = scmp.ne.s32.totalorder %s146, %s149
      %p155 = scmp.eq.s32.totalorder %s21, 0
      %p156 = por %p154, %p155
      %p157 = scmp.ne.s32.totalorder %s146, %s149
      %p158 = scmp.eq.s32.totalorder %s26, 2
      %p159 = por %p157, %p158
      %p160 = scmp.ne.s32.totalorder %s149, %s150
      %p161 = scmp.eq.s32.totalorder %s26, 0
      %p162 = por %p160, %p161
      %p163 = scmp.ne.s32.totalorder %s149, %s150
      %p164 = scmp.eq.s32.totalorder %s27, 2
      %p165 = por %p163, %p164
      %p167 = scmp.ne.s32.totalorder %s150, %s166
      %p168 = scmp.eq.s32.totalorder %s27, 0
      %p169 = por %p167, %p168
      %s171 = sadd.s32 %s170, 1
      %p174 = scmp.eq.s32.totalorder %s21, 2
      %p175 = scmp.ne.s32.totalorder %s170, %s172
      %p176 = scmp.eq.s32.totalorder %s21, 0
      %p177 = por %p175, %p176
      %p178 = scmp.ne.s32.totalorder %s170, %s172
      %p179 = scmp.eq.s32.totalorder %s26, 2
      %p180 = por %p178, %p179
      %p181 = scmp.ne.s32.totalorder %s172, %s173
      %p182 = scmp.eq.s32.totalorder %s26, 0
      %p183 = por %p181, %p182
      %p184 = scmp.ne.s32.totalorder %s172, %s173
      %p185 = scmp.eq.s32.totalorder %s27, 2
      %p186 = por %p184, %p185
      %p188 = scmp.ne.s32.totalorder %s173, %s187
      %p189 = scmp.eq.s32.totalorder %s27, 0
      %p190 = por %p188, %p189
      %p191 = scmp.le.s32.totalorder 1, %s21
      %p192 = scmp.lt.s32.totalorder %s21, 4
      %p193 = pnand %p191, %p192
      %p194 = pneg %p193
      // Predicated region
      $region9: #{tpu_custom_call.1} parent=5 // pred_check
        _
      $region10: #{tpu_custom_call.1} parent=5 // pred_check_branch
        %196 = sbr.rel (%p193) target = $region12
      $region11: #{tpu_custom_call.1} parent=5 // pred_region
        %s197 = ssub.s32 %s21, 1
        // Predicated region
        $region13: #{tpu_custom_call.1} parent=11 // pred_check
          %p198 = pneg %p42
        $region14: #{tpu_custom_call.1} parent=11 // pred_check_branch
          %200 = sbr.rel (%p198) target = $region16
        $region15: #{tpu_custom_call.1} parent=11 // pred_region
          %s202 = ssub.s32 1024, 1024
          %203 = vsyncadd [#allocation5], %s202
          %s204 = sshll.u32 [#allocation4], 4
          %s205 = int_to_ptr.vmem [resolvable:$true] %s204
          %210 = dma.hbm_to_vmem [thread:$0]  %s0, 1024, %s205, [#allocation5], 128, 128, 8
        $region16: #{tpu_custom_call.1} parent=11 // pred_fallthru
          _
        // Predicated region
        $region17: #{tpu_custom_call.1} parent=11 // pred_check
          %p211 = pneg %p63
        $region18: #{tpu_custom_call.1} parent=11 // pred_check_branch
          %213 = sbr.rel (%p211) target = $region20
        $region19: #{tpu_custom_call.1} parent=11 // pred_region
          %s215 = ssub.s32 2048, 2048
          %216 = vsyncadd [#allocation8], %s215
          %s217 = sshll.u32 [#allocation7], 4
          %s218 = int_to_ptr.vmem [resolvable:$true] %s217
          %223 = dma.hbm_to_vmem [thread:$0]  %s1, 2048, %s218, [#allocation8], 128, 128, 8
        $region20: #{tpu_custom_call.1} parent=11 // pred_fallthru
          _
        // Predicated region
        $region21: #{tpu_custom_call.1} parent=11 // pred_check
          %p224 = pneg %p84
        $region22: #{tpu_custom_call.1} parent=11 // pred_check_branch
          %226 = sbr.rel (%p224) target = $region24
        $region23: #{tpu_custom_call.1} parent=11 // pred_region
          %s228 = ssub.s32 16, 16
          %229 = vsyncadd [#allocation8], %s228
          %s231 = sshll.u32 [#allocation9], 4
          %s232 = int_to_ptr.vmem [resolvable:$true] %s231
          %234 = dma.hbm_to_vmem [thread:$0]  %s2, 16, %s232, [#allocation8]
        $region24: #{tpu_custom_call.1} parent=11 // pred_fallthru
          _
      $region12: #{tpu_custom_call.1} parent=5 // pred_fallthru
        _
      %p235 = scmp.lt.s32.totalorder %s21, 3
      // Predicated region
      $region25: #{tpu_custom_call.1} parent=5 // pred_check
        %p236 = pneg %p235
      $region26: #{tpu_custom_call.1} parent=5 // pred_check_branch
        %238 = sbr.rel (%p236) target = $region28
      $region27: #{tpu_custom_call.1} parent=5 // pred_region
        // Predicated region
        $region29: #{tpu_custom_call.1} parent=27 // pred_check
          %p239 = pneg %p104
        $region30: #{tpu_custom_call.1} parent=27 // pred_check_branch
          %241 = sbr.rel (%p239) target = $region32
        $region31: #{tpu_custom_call.1} parent=27 // pred_region
          %s242 = sand.u32 %s21, 1
          %s243 = scalar_lea.sflag [#allocation11], %s242
          %s244 = sand.u32 %s94, 1
          %s245 = scalar_lea.vmem [#allocation10], %s244
          %s247 = ssub.s32 16, 16
          %248 = vsyncadd %s243, %s247
          %s249 = smul.addr %s21, 16
          %s250 = scalar_lea.hbm %s3, %s249
          %s252 = sshll.u32 %s245, 4
          %s253 = int_to_ptr.vmem [resolvable:$true] %s252
          %255 = dma.hbm_to_vmem [thread:$0]  %s250, 16, %s253, %s243
        $region32: #{tpu_custom_call.1} parent=27 // pred_fallthru
          _
        // Predicated region
        $region33: #{tpu_custom_call.1} parent=27 // pred_check
          %p256 = pneg %p130
        $region34: #{tpu_custom_call.1} parent=27 // pred_check_branch
          %258 = sbr.rel (%p256) target = $region36
        $region35: #{tpu_custom_call.1} parent=27 // pred_region
          %s259 = sand.u32 %s21, 1
          %s260 = scalar_lea.sflag [#allocation11], %s259
          %s261 = sand.u32 %s120, 1
          %s262 = smul.addr %s261, 128
          %s263 = scalar_lea.vmem [#allocation12], %s262
          %s264 = smul.u32 16, %s21
          %s266 = ssub.s32 2048, 2048
          %267 = vsyncadd %s260, %s266
          %s268 = smul.addr %s264, 128
          %s269 = scalar_lea.hbm %s4, %s268
          %s270 = sshll.u32 %s263, 4
          %s271 = int_to_ptr.vmem [resolvable:$true] %s270
          %276 = dma.hbm_to_vmem [thread:$0]  %s269, 2048, %s271, %s260, 128, 128, 8
        $region36: #{tpu_custom_call.1} parent=27 // pred_fallthru
          _
        // Predicated region
        $region37: #{tpu_custom_call.1} parent=27 // pred_check
          %p277 = pneg %p156
        $region38: #{tpu_custom_call.1} parent=27 // pred_check_branch
          %279 = sbr.rel (%p277) target = $region40
        $region39: #{tpu_custom_call.1} parent=27 // pred_region
          %s280 = sand.u32 %s146, 1
          %s281 = scalar_lea.sflag [#allocation14], %s280
          %s282 = sand.u32 %s146, 1
          %s283 = smul.addr %s282, 128
          %s284 = scalar_lea.vmem [#allocation13], %s283
          %s285 = smul.u32 16, %s21
          %s287 = ssub.s32 2048, 2048
          %288 = vsyncadd %s281, %s287
          %s289 = smul.addr %s285, 128
          %s290 = scalar_lea.hbm %s5, %s289
          %s291 = sshll.u32 %s284, 4
          %s292 = int_to_ptr.vmem [resolvable:$true] %s291
          %297 = dma.hbm_to_vmem [thread:$0]  %s290, 2048, %s292, %s281, 128, 128, 8
        $region40: #{tpu_custom_call.1} parent=27 // pred_fallthru
          _
      $region28: #{tpu_custom_call.1} parent=5 // pred_fallthru
        _
      %p298 = scmp.le.s32.totalorder 1, %s21
      %p299 = scmp.lt.s32.totalorder %s21, 4
      %p300 = pnand %p298, %p299
      %p301 = pneg %p300
      // Predicated region
      $region41: #{tpu_custom_call.1} parent=5 // pred_check
        _
      $region42: #{tpu_custom_call.1} parent=5 // pred_check_branch
        %303 = sbr.rel (%p300) target = $region44
      $region43: #{tpu_custom_call.1} parent=5 // pred_region
        %s304 = ssub.s32 %s21, 1
        // Predicated region
        $region45: #{tpu_custom_call.1} parent=43 // pred_check
          %p305 = pneg %p42
        $region46: #{tpu_custom_call.1} parent=43 // pred_check_branch
          %307 = sbr.rel (%p305) target = $region48
        $region47: #{tpu_custom_call.1} parent=43 // pred_region
          %308 = dma.done [#allocation5], 1024
        $region48: #{tpu_custom_call.1} parent=43 // pred_fallthru
          _
        // Predicated region
        $region49: #{tpu_custom_call.1} parent=43 // pred_check
          %p309 = pneg %p63
        $region50: #{tpu_custom_call.1} parent=43 // pred_check_branch
          %311 = sbr.rel (%p309) target = $region52
        $region51: #{tpu_custom_call.1} parent=43 // pred_region
          %312 = dma.done [#allocation8], 2048
        $region52: #{tpu_custom_call.1} parent=43 // pred_fallthru
          _
        // Predicated region
        $region53: #{tpu_custom_call.1} parent=43 // pred_check
          %p313 = pneg %p84
        $region54: #{tpu_custom_call.1} parent=43 // pred_check_branch
          %315 = sbr.rel (%p313) target = $region56
        $region55: #{tpu_custom_call.1} parent=43 // pred_region
          %316 = dma.done [#allocation8], 16
        $region56: #{tpu_custom_call.1} parent=43 // pred_fallthru
          _
        %s317 = sand.u32 %s26, 1
        %s318 = scalar_lea.sflag [#allocation11], %s317
        %s319 = sand.u32 %s97, 1
        %s320 = scalar_lea.vmem [#allocation10], %s319
        // Predicated region
        $region57: #{tpu_custom_call.1} parent=43 // pred_check
          %p321 = pneg %p110
        $region58: #{tpu_custom_call.1} parent=43 // pred_check_branch
          %323 = sbr.rel (%p321) target = $region60
        $region59: #{tpu_custom_call.1} parent=43 // pred_region
          %324 = dma.done %s318, 16
        $region60: #{tpu_custom_call.1} parent=43 // pred_fallthru
          _
        %s325 = sand.u32 %s26, 1
        %s326 = scalar_lea.sflag [#allocation11], %s325
        %s327 = sand.u32 %s123, 1
        %s328 = smul.addr %s327, 128
        %s329 = scalar_lea.vmem [#allocation12], %s328
        // Predicated region
        $region61: #{tpu_custom_call.1} parent=43 // pred_check
          %p330 = pneg %p136
        $region62: #{tpu_custom_call.1} parent=43 // pred_check_branch
          %332 = sbr.rel (%p330) target = $region64
        $region63: #{tpu_custom_call.1} parent=43 // pred_region
          %333 = dma.done %s326, 2048
        $region64: #{tpu_custom_call.1} parent=43 // pred_fallthru
          _
        %s334 = sand.u32 %s149, 1
        %s335 = scalar_lea.sflag [#allocation14], %s334
        %s336 = sand.u32 %s149, 1
        %s337 = smul.addr %s336, 128
        %s338 = scalar_lea.vmem [#allocation13], %s337
        // Predicated region
        $region65: #{tpu_custom_call.1} parent=43 // pred_check
          %p339 = pneg %p162
        $region66: #{tpu_custom_call.1} parent=43 // pred_check_branch
          %341 = sbr.rel (%p339) target = $region68
        $region67: #{tpu_custom_call.1} parent=43 // pred_region
          %342 = dma.done %s335, 2048
        $region68: #{tpu_custom_call.1} parent=43 // pred_fallthru
          _
        %p343 = pneg %p42
        %p344 = pneg %p39
        %p345 = pneg %p63
        %p346 = pneg %p60
        %p347 = pneg %p84
        %p348 = pneg %p81
        %s349 = sand.u32 %s26, 1
        %s350 = scalar_lea.sflag [#allocation11], %s349
        %s351 = sand.u32 %s97, 1
        %s352 = scalar_lea.vmem [#allocation10], %s351
        %p353 = pneg %p110
        %p354 = pneg %p107
        %s355 = sand.u32 %s26, 1
        %s356 = scalar_lea.sflag [#allocation11], %s355
        %s357 = sand.u32 %s123, 1
        %s358 = smul.addr %s357, 128
        %s359 = scalar_lea.vmem [#allocation12], %s358
        %p360 = pneg %p136
        %p361 = pneg %p133
        %s362 = sand.u32 %s149, 1
        %s363 = scalar_lea.sflag [#allocation14], %s362
        %s364 = sand.u32 %s149, 1
        %s365 = smul.addr %s364, 128
        %s366 = scalar_lea.vmem [#allocation13], %s365
        %p367 = pneg %p162
        %p368 = pneg %p159
        %p369 = pneg %p183
        %p370 = pneg %p180
        %s371 = smul.u32 16, %s26
        %s372 = smul.u32 16, %s26
        %p373 = scmp.eq.s32.totalorder %s26, 0
        // Predicated region
        $region69: #{tpu_custom_call.1} parent=43 // pred_check
          %p374 = pneg %p373
        $region70: #{tpu_custom_call.1} parent=43 // pred_check_branch
          %376 = sbr.rel (%p374) target = $region72
        $region71: #{tpu_custom_call.1} parent=43 // pred_region
          %v377 = vld [vmem:[#allocation4] sm:$0xff]
          %v378 = vld [vmem:[#allocation4 + $0x8] sm:$0xff]
          %v379 = vld [vmem:[#allocation4 + $0x10] sm:$0xff]
          %v380 = vld [vmem:[#allocation4 + $0x18] sm:$0xff]
          %v381 = vld [vmem:[#allocation4 + $0x20] sm:$0xff]
          %v382 = vld [vmem:[#allocation4 + $0x28] sm:$0xff]
          %v383 = vld [vmem:[#allocation4 + $0x30] sm:$0xff]
          %v384 = vld [vmem:[#allocation4 + $0x38] sm:$0xff]
          %v385 = vld [vmem:[#allocation7] sm:$0xff]
          %v386 = vld [vmem:[#allocation7 + $0x8] sm:$0xff]
          %v387 = vld [vmem:[#allocation7 + $0x10] sm:$0xff]
          %v388 = vld [vmem:[#allocation7 + $0x18] sm:$0xff]
          %v389 = vld [vmem:[#allocation7 + $0x20] sm:$0xff]
          %v390 = vld [vmem:[#allocation7 + $0x28] sm:$0xff]
          %v391 = vld [vmem:[#allocation7 + $0x30] sm:$0xff]
          %v392 = vld [vmem:[#allocation7 + $0x38] sm:$0xff]
          %v393 = vld [vmem:[#allocation7 + $0x40] sm:$0xff]
          %v394 = vld [vmem:[#allocation7 + $0x48] sm:$0xff]
          %v395 = vld [vmem:[#allocation7 + $0x50] sm:$0xff]
          %v396 = vld [vmem:[#allocation7 + $0x58] sm:$0xff]
          %v397 = vld [vmem:[#allocation7 + $0x60] sm:$0xff]
          %v398 = vld [vmem:[#allocation7 + $0x68] sm:$0xff]
          %v399 = vld [vmem:[#allocation7 + $0x70] sm:$0xff]
          %v400 = vld [vmem:[#allocation7 + $0x78] sm:$0xff]
          %v401 = vld [vmem:[#allocation9] sm:$0x1]
          %v403 = vlaneseq
          %v404 = vshrl.u32 %v403, 7
          %v405 = vsub.s32 0, %v404
          %v406 = vrot.slane %v401, %v405
          %408 = vmatprep.subr.mxu0 0.0
          %409 = vmatpush1.msra.mxu0 %v385
          %410 = vmatprep.subr.mxu0 0.0
          %411 = vmatpush1.msra.mxu0 %v386
          %412 = vmatprep.subr.mxu0 0.0
          %413 = vmatpush1.msra.mxu0 %v387
          %414 = vmatprep.subr.mxu0 0.0
          %415 = vmatpush1.msra.mxu0 %v388
          %416 = vmatprep.subr.mxu0 0.0
          %417 = vmatpush1.msra.mxu0 %v389
          %418 = vmatprep.subr.mxu0 0.0
          %419 = vmatpush1.msra.mxu0 %v390
          %420 = vmatprep.subr.mxu0 0.0
          %421 = vmatpush1.msra.mxu0 %v391
          %422 = vmatprep.subr.mxu0 0.0
          %423 = vmatpush1.msra.mxu0 %v392
          %424 = vmatprep.subr.mxu0 0.0
          %425 = vmatpush1.msra.mxu0 %v393
          %426 = vmatprep.subr.mxu0 0.0
          %427 = vmatpush1.msra.mxu0 %v394
          %428 = vmatprep.subr.mxu0 0.0
          %429 = vmatpush1.msra.mxu0 %v395
          %430 = vmatprep.subr.mxu0 0.0
          %431 = vmatpush1.msra.mxu0 %v396
          %432 = vmatprep.subr.mxu0 0.0
          %433 = vmatpush1.msra.mxu0 %v397
          %434 = vmatprep.subr.mxu0 0.0
          %435 = vmatpush1.msra.mxu0 %v398
          %436 = vmatprep.subr.mxu0 0.0
          %437 = vmatpush1.msra.mxu0 %v399
          %438 = vmatprep.subr.mxu0 0.0
          %439 = vmatpush1.msra.mxu0 %v400
          %440 = vmatprep.subr.mxu0 0.0
          %441 = vmatpush1.msra.mxu0 0.0
          %442 = vmatprep.subr.mxu0 0.0
          %443 = vmatpush1.msra.mxu0 0.0
          %444 = vmatprep.subr.mxu0 0.0
          %445 = vmatpush1.msra.mxu0 0.0
          %446 = vmatprep.subr.mxu0 0.0
          %447 = vmatpush1.msra.mxu0 0.0
          %448 = vmatprep.subr.mxu0 0.0
          %449 = vmatpush1.msra.mxu0 0.0
          %450 = vmatprep.subr.mxu0 0.0
          %451 = vmatpush1.msra.mxu0 0.0
          %452 = vmatprep.subr.mxu0 0.0
          %453 = vmatpush1.msra.mxu0 0.0
          %454 = vmatprep.subr.mxu0 0.0
          %455 = vmatpush1.msra.mxu0 0.0
          %456 = vmatprep.subr.mxu0 0.0
          %457 = vmatpush1.msra.mxu0 0.0
          %458 = vmatprep.subr.mxu0 0.0
          %459 = vmatpush1.msra.mxu0 0.0
          %460 = vmatprep.subr.mxu0 0.0
          %461 = vmatpush1.msra.mxu0 0.0
          %462 = vmatprep.subr.mxu0 0.0
          %463 = vmatpush1.msra.mxu0 0.0
          %464 = vmatprep.subr.mxu0 0.0
          %465 = vmatpush1.msra.mxu0 0.0
          %466 = vmatprep.subr.mxu0 0.0
          %467 = vmatpush1.msra.mxu0 0.0
          %468 = vmatprep.subr.mxu0 0.0
          %469 = vmatpush1.msra.mxu0 0.0
          %470 = vmatprep.subr.mxu0 0.0
          %471 = vmatpush1.msra.mxu0 0.0
          %472 = vmatprep.mubr.f32.mxu0 0.0
          %473 = vmatmul.mubr.f32.gmra.mrb[0].mxu0 %v377
          %v474 = vpop.f32.mrb[0].mxu0
          %v475 = vadd.f32 %v406, %v474
          %v476 = vpop.f32.mrb[0].mxu0
          %477 = vmatprep.mubr.f32.mxu0 0.0
          %478 = vmatmul.mubr.f32.gmra.mrb[0].mxu0 %v378
          %v479 = vpop.f32.mrb[0].mxu0
          %v480 = vadd.f32 %v406, %v479
          %v481 = vpop.f32.mrb[0].mxu0
          %482 = vmatprep.mubr.f32.mxu0 0.0
          %483 = vmatmul.mubr.f32.gmra.mrb[0].mxu0 %v379
          %v484 = vpop.f32.mrb[0].mxu0
          %v485 = vadd.f32 %v406, %v484
          %v486 = vpop.f32.mrb[0].mxu0
          %487 = vmatprep.mubr.f32.mxu0 0.0
          %488 = vmatmul.mubr.f32.gmra.mrb[0].mxu0 %v380
          %v489 = vpop.f32.mrb[0].mxu0
          %v490 = vadd.f32 %v406, %v489
          %v491 = vpop.f32.mrb[0].mxu0
          %492 = vmatprep.mubr.f32.mxu0 0.0
          %493 = vmatmul.mubr.f32.gmra.mrb[0].mxu0 %v381
          %v494 = vpop.f32.mrb[0].mxu0
          %v495 = vadd.f32 %v406, %v494
          %v496 = vpop.f32.mrb[0].mxu0
          %497 = vmatprep.mubr.f32.mxu0 0.0
          %498 = vmatmul.mubr.f32.gmra.mrb[0].mxu0 %v382
          %v499 = vpop.f32.mrb[0].mxu0
          %v500 = vadd.f32 %v406, %v499
          %v501 = vpop.f32.mrb[0].mxu0
          %502 = vmatprep.mubr.f32.mxu0 0.0
          %503 = vmatmul.mubr.f32.gmra.mrb[0].mxu0 %v383
          %v504 = vpop.f32.mrb[0].mxu0
          %v505 = vadd.f32 %v406, %v504
          %v506 = vpop.f32.mrb[0].mxu0
          %507 = vmatprep.mubr.f32.mxu0 0.0
          %508 = vmatmul.mubr.f32.gmra.mrb[0].mxu0 %v384
          %v509 = vpop.f32.mrb[0].mxu0
          %v510 = vadd.f32 %v406, %v509
          %v511 = vpop.f32.mrb[0].mxu0
          %512 = vdwg.mxu0
          %513 = vst [vmem:[#allocation2] sm:$0xff] %v475
          %514 = vst [vmem:[#allocation2 + $0x8] sm:$0xff] %v480
          %515 = vst [vmem:[#allocation2 + $0x10] sm:$0xff] %v485
          %516 = vst [vmem:[#allocation2 + $0x18] sm:$0xff] %v490
          %517 = vst [vmem:[#allocation2 + $0x20] sm:$0xff] %v495
          %518 = vst [vmem:[#allocation2 + $0x28] sm:$0xff] %v500
          %519 = vst [vmem:[#allocation2 + $0x30] sm:$0xff] %v505
          %520 = vst [vmem:[#allocation2 + $0x38] sm:$0xff] %v510
          %521 = vst [vmem:[#allocation3] sm:$0xff] 0.0
          %522 = vst [vmem:[#allocation3 + $0x8] sm:$0xff] 0.0
          %523 = vst [vmem:[#allocation3 + $0x10] sm:$0xff] 0.0
          %524 = vst [vmem:[#allocation3 + $0x18] sm:$0xff] 0.0
          %525 = vst [vmem:[#allocation3 + $0x20] sm:$0xff] 0.0
          %526 = vst [vmem:[#allocation3 + $0x28] sm:$0xff] 0.0
          %527 = vst [vmem:[#allocation3 + $0x30] sm:$0xff] 0.0
          %528 = vst [vmem:[#allocation3 + $0x38] sm:$0xff] 0.0
        $region72: #{tpu_custom_call.1} parent=43 // pred_fallthru
          _
        %v529 = vld [vmem:[%s329] sm:$0xff]
        %v530 = vld [vmem:[%s329 + $0x8] sm:$0xff]
        %v531 = vld [vmem:[%s329 + $0x10] sm:$0xff]
        %v532 = vld [vmem:[%s329 + $0x18] sm:$0xff]
        %v533 = vld [vmem:[%s329 + $0x20] sm:$0xff]
        %v534 = vld [vmem:[%s329 + $0x28] sm:$0xff]
        %v535 = vld [vmem:[%s329 + $0x30] sm:$0xff]
        %v536 = vld [vmem:[%s329 + $0x38] sm:$0xff]
        %v537 = vld [vmem:[%s329 + $0x40] sm:$0xff]
        %v538 = vld [vmem:[%s329 + $0x48] sm:$0xff]
        %v539 = vld [vmem:[%s329 + $0x50] sm:$0xff]
        %v540 = vld [vmem:[%s329 + $0x58] sm:$0xff]
        %v541 = vld [vmem:[%s329 + $0x60] sm:$0xff]
        %v542 = vld [vmem:[%s329 + $0x68] sm:$0xff]
        %v543 = vld [vmem:[%s329 + $0x70] sm:$0xff]
        %v544 = vld [vmem:[%s329 + $0x78] sm:$0xff]
        %v545 = vld [vmem:[%s338] sm:$0xff]
        %v546 = vld [vmem:[%s338 + $0x8] sm:$0xff]
        %v547 = vld [vmem:[%s338 + $0x10] sm:$0xff]
        %v548 = vld [vmem:[%s338 + $0x18] sm:$0xff]
        %v549 = vld [vmem:[%s338 + $0x20] sm:$0xff]
        %v550 = vld [vmem:[%s338 + $0x28] sm:$0xff]
        %v551 = vld [vmem:[%s338 + $0x30] sm:$0xff]
        %v552 = vld [vmem:[%s338 + $0x38] sm:$0xff]
        %v553 = vld [vmem:[%s338 + $0x40] sm:$0xff]
        %v554 = vld [vmem:[%s338 + $0x48] sm:$0xff]
        %v555 = vld [vmem:[%s338 + $0x50] sm:$0xff]
        %v556 = vld [vmem:[%s338 + $0x58] sm:$0xff]
        %v557 = vld [vmem:[%s338 + $0x60] sm:$0xff]
        %v558 = vld [vmem:[%s338 + $0x68] sm:$0xff]
        %v559 = vld [vmem:[%s338 + $0x70] sm:$0xff]
        %v560 = vld [vmem:[%s338 + $0x78] sm:$0xff]
        %v561 = vld [vmem:[%s320] sm:$0x1]
        %v562 = vlaneseq
        %v563 = vand.u32 %v562, 127
        %564 = vset.pattern.permute.xlu0 0
        %565 = vperm.xlu0 %564, %v529
        %v566 = vpop.permute.xlu0 %565
        %567 = vset.pattern.permute.xlu0 0
        %568 = vperm.xlu0 %567, %v530
        %v569 = vpop.permute.xlu0 %568
        %570 = vset.pattern.permute.xlu0 0
        %571 = vperm.xlu0 %570, %v531
        %v572 = vpop.permute.xlu0 %571
        %573 = vset.pattern.permute.xlu0 0
        %574 = vperm.xlu0 %573, %v532
        %v575 = vpop.permute.xlu0 %574
        %576 = vset.pattern.permute.xlu0 0
        %577 = vperm.xlu0 %576, %v533
        %v578 = vpop.permute.xlu0 %577
        %579 = vset.pattern.permute.xlu0 0
        %580 = vperm.xlu0 %579, %v534
        %v581 = vpop.permute.xlu0 %580
        %582 = vset.pattern.permute.xlu0 0
        %583 = vperm.xlu0 %582, %v535
        %v584 = vpop.permute.xlu0 %583
        %585 = vset.pattern.permute.xlu0 0
        %586 = vperm.xlu0 %585, %v536
        %v587 = vpop.permute.xlu0 %586
        %588 = vset.pattern.permute.xlu0 0
        %589 = vperm.xlu0 %588, %v537
        %v590 = vpop.permute.xlu0 %589
        %591 = vset.pattern.permute.xlu0 0
        %592 = vperm.xlu0 %591, %v538
        %v593 = vpop.permute.xlu0 %592
        %594 = vset.pattern.permute.xlu0 0
        %595 = vperm.xlu0 %594, %v539
        %v596 = vpop.permute.xlu0 %595
        %597 = vset.pattern.permute.xlu0 0
        %598 = vperm.xlu0 %597, %v540
        %v599 = vpop.permute.xlu0 %598
        %600 = vset.pattern.permute.xlu0 0
        %601 = vperm.xlu0 %600, %v541
        %v602 = vpop.permute.xlu0 %601
        %603 = vset.pattern.permute.xlu0 0
        %604 = vperm.xlu0 %603, %v542
        %v605 = vpop.permute.xlu0 %604
        %606 = vset.pattern.permute.xlu0 0
        %607 = vperm.xlu0 %606, %v543
        %v608 = vpop.permute.xlu0 %607
        %609 = vset.pattern.permute.xlu0 0
        %610 = vperm.xlu0 %609, %v544
        %v611 = vpop.permute.xlu0 %610
        %vm612 = vcmp.eq.s32.totalorder %v563, %v566
        %vm613 = vcmp.eq.s32.totalorder %v563, %v569
        %vm614 = vcmp.eq.s32.totalorder %v563, %v572
        %vm615 = vcmp.eq.s32.totalorder %v563, %v575
        %vm616 = vcmp.eq.s32.totalorder %v563, %v578
        %vm617 = vcmp.eq.s32.totalorder %v563, %v581
        %vm618 = vcmp.eq.s32.totalorder %v563, %v584
        %vm619 = vcmp.eq.s32.totalorder %v563, %v587
        %vm620 = vcmp.eq.s32.totalorder %v563, %v590
        %vm621 = vcmp.eq.s32.totalorder %v563, %v593
        %vm622 = vcmp.eq.s32.totalorder %v563, %v596
        %vm623 = vcmp.eq.s32.totalorder %v563, %v599
        %vm624 = vcmp.eq.s32.totalorder %v563, %v602
        %vm625 = vcmp.eq.s32.totalorder %v563, %v605
        %vm626 = vcmp.eq.s32.totalorder %v563, %v608
        %vm627 = vcmp.eq.s32.totalorder %v563, %v611
        %v628 = vsel %vm612, 1, 0
        %v629 = vsel %vm613, 1, 0
        %v630 = vsel %vm614, 1, 0
        %v631 = vsel %vm615, 1, 0
        %v632 = vsel %vm616, 1, 0
        %v633 = vsel %vm617, 1, 0
        %v634 = vsel %vm618, 1, 0
        %v635 = vsel %vm619, 1, 0
        %v636 = vsel %vm620, 1, 0
        %v637 = vsel %vm621, 1, 0
        %v638 = vsel %vm622, 1, 0
        %v639 = vsel %vm623, 1, 0
        %v640 = vsel %vm624, 1, 0
        %v641 = vsel %vm625, 1, 0
        %v642 = vsel %vm626, 1, 0
        %v643 = vsel %vm627, 1, 0
        %v644 = vcvt.s32.f32 %v628
        %v645 = vcvt.s32.f32 %v629
        %v646 = vcvt.s32.f32 %v630
        %v647 = vcvt.s32.f32 %v631
        %v648 = vcvt.s32.f32 %v632
        %v649 = vcvt.s32.f32 %v633
        %v650 = vcvt.s32.f32 %v634
        %v651 = vcvt.s32.f32 %v635
        %v652 = vcvt.s32.f32 %v636
        %v653 = vcvt.s32.f32 %v637
        %v654 = vcvt.s32.f32 %v638
        %v655 = vcvt.s32.f32 %v639
        %v656 = vcvt.s32.f32 %v640
        %v657 = vcvt.s32.f32 %v641
        %v658 = vcvt.s32.f32 %v642
        %v659 = vcvt.s32.f32 %v643
        %v660 = vld [vmem:[#allocation2] sm:$0xff]
        %v661 = vld [vmem:[#allocation2 + $0x8] sm:$0xff]
        %v662 = vld [vmem:[#allocation2 + $0x10] sm:$0xff]
        %v663 = vld [vmem:[#allocation2 + $0x18] sm:$0xff]
        %v664 = vld [vmem:[#allocation2 + $0x20] sm:$0xff]
        %v665 = vld [vmem:[#allocation2 + $0x28] sm:$0xff]
        %v666 = vld [vmem:[#allocation2 + $0x30] sm:$0xff]
        %v667 = vld [vmem:[#allocation2 + $0x38] sm:$0xff]
        %vm668 = vcmask 523264
        %v670 = vsel %vm668, %v644, 0
        %v673 = vsel %vm668, %v645, 0
        %v676 = vsel %vm668, %v646, 0
        %v679 = vsel %vm668, %v647, 0
        %v682 = vsel %vm668, %v648, 0
        %v685 = vsel %vm668, %v649, 0
        %v688 = vsel %vm668, %v650, 0
        %v691 = vsel %vm668, %v651, 0
        %v694 = vsel %vm668, %v652, 0
        %v697 = vsel %vm668, %v653, 0
        %v700 = vsel %vm668, %v654, 0
        %v703 = vsel %vm668, %v655, 0
        %v706 = vsel %vm668, %v656, 0
        %v709 = vsel %vm668, %v657, 0
        %v712 = vsel %vm668, %v658, 0
        %v715 = vsel %vm668, %v659, 0
        %717 = vmatprep.subr.mxu0 0.0
        %718 = vmatpush1.msra.mxu0 %v660
        %719 = vmatprep.subr.mxu0 0.0
        %720 = vmatpush1.msra.mxu0 %v661
        %721 = vmatprep.subr.mxu0 0.0
        %722 = vmatpush1.msra.mxu0 %v662
        %723 = vmatprep.subr.mxu0 0.0
        %724 = vmatpush1.msra.mxu0 %v663
        %725 = vmatprep.subr.mxu0 0.0
        %726 = vmatpush1.msra.mxu0 %v664
        %727 = vmatprep.subr.mxu0 0.0
        %728 = vmatpush1.msra.mxu0 %v665
        %729 = vmatprep.subr.mxu0 0.0
        %730 = vmatpush1.msra.mxu0 %v666
        %731 = vmatprep.subr.mxu0 0.0
        %732 = vmatpush1.msra.mxu0 %v667
        %733 = vmatprep.subr.mxu0 0.0
        %734 = vmatpush1.msra.mxu0 0.0
        %735 = vmatprep.subr.mxu0 0.0
        %736 = vmatpush1.msra.mxu0 0.0
        %737 = vmatprep.subr.mxu0 0.0
        %738 = vmatpush1.msra.mxu0 0.0
        %739 = vmatprep.subr.mxu0 0.0
        %740 = vmatpush1.msra.mxu0 0.0
        %741 = vmatprep.subr.mxu0 0.0
        %742 = vmatpush1.msra.mxu0 0.0
        %743 = vmatprep.subr.mxu0 0.0
        %744 = vmatpush1.msra.mxu0 0.0
        %745 = vmatprep.subr.mxu0 0.0
        %746 = vmatpush1.msra.mxu0 0.0
        %747 = vmatprep.subr.mxu0 0.0
        %748 = vmatpush1.msra.mxu0 0.0
        %749 = vmatprep.subr.mxu0 0.0
        %750 = vmatpush1.msra.mxu0 0.0
        %751 = vmatprep.subr.mxu0 0.0
        %752 = vmatpush1.msra.mxu0 0.0
        %753 = vmatprep.subr.mxu0 0.0
        %754 = vmatpush1.msra.mxu0 0.0
        %755 = vmatprep.subr.mxu0 0.0
        %756 = vmatpush1.msra.mxu0 0.0
        %757 = vmatprep.subr.mxu0 0.0
        %758 = vmatpush1.msra.mxu0 0.0
        %759 = vmatprep.subr.mxu0 0.0
        %760 = vmatpush1.msra.mxu0 0.0
        %761 = vmatprep.subr.mxu0 0.0
        %762 = vmatpush1.msra.mxu0 0.0
        %763 = vmatprep.subr.mxu0 0.0
        %764 = vmatpush1.msra.mxu0 0.0
        %765 = vmatprep.subr.mxu0 0.0
        %766 = vmatpush1.msra.mxu0 0.0
        %767 = vmatprep.subr.mxu0 0.0
        %768 = vmatpush1.msra.mxu0 0.0
        %769 = vmatprep.subr.mxu0 0.0
        %770 = vmatpush1.msra.mxu0 0.0
        %771 = vmatprep.subr.mxu0 0.0
        %772 = vmatpush1.msra.mxu0 0.0
        %773 = vmatprep.subr.mxu0 0.0
        %774 = vmatpush1.msra.mxu0 0.0
        %775 = vmatprep.subr.mxu0 0.0
        %776 = vmatpush1.msra.mxu0 0.0
        %777 = vmatprep.subr.mxu0 0.0
        %778 = vmatpush1.msra.mxu0 0.0
        %779 = vmatprep.subr.mxu0 0.0
        %780 = vmatpush1.msra.mxu0 0.0
        %781 = vmatprep.mubr.f32.mxu0 0.0
        %782 = vmatmul.mubr.f32.gmra.mrb[0].mxu0 %v670
        %v783 = vpop.f32.mrb[0].mxu0
        %v784 = vadd.f32 0.0, %v783
        %v785 = vpop.f32.mrb[0].mxu0
        %786 = vmatprep.mubr.f32.mxu0 0.0
        %787 = vmatmul.mubr.f32.gmra.mrb[0].mxu0 %v673
        %v788 = vpop.f32.mrb[0].mxu0
        %v789 = vadd.f32 0.0, %v788
        %v790 = vpop.f32.mrb[0].mxu0
        %791 = vmatprep.mubr.f32.mxu0 0.0
        %792 = vmatmul.mubr.f32.gmra.mrb[0].mxu0 %v676
        %v793 = vpop.f32.mrb[0].mxu0
        %v794 = vadd.f32 0.0, %v793
        %v795 = vpop.f32.mrb[0].mxu0
        %796 = vmatprep.mubr.f32.mxu0 0.0
        %797 = vmatmul.mubr.f32.gmra.mrb[0].mxu0 %v679
        %v798 = vpop.f32.mrb[0].mxu0
        %v799 = vadd.f32 0.0, %v798
        %v800 = vpop.f32.mrb[0].mxu0
        %801 = vmatprep.mubr.f32.mxu0 0.0
        %802 = vmatmul.mubr.f32.gmra.mrb[0].mxu0 %v682
        %v803 = vpop.f32.mrb[0].mxu0
        %v804 = vadd.f32 0.0, %v803
        %v805 = vpop.f32.mrb[0].mxu0
        %806 = vmatprep.mubr.f32.mxu0 0.0
        %807 = vmatmul.mubr.f32.gmra.mrb[0].mxu0 %v685
        %v808 = vpop.f32.mrb[0].mxu0
        %v809 = vadd.f32 0.0, %v808
        %v810 = vpop.f32.mrb[0].mxu0
        %811 = vmatprep.mubr.f32.mxu0 0.0
        %812 = vmatmul.mubr.f32.gmra.mrb[0].mxu0 %v688
        %v813 = vpop.f32.mrb[0].mxu0
        %v814 = vadd.f32 0.0, %v813
        %v815 = vpop.f32.mrb[0].mxu0
        %816 = vmatprep.mubr.f32.mxu0 0.0
        %817 = vmatmul.mubr.f32.gmra.mrb[0].mxu0 %v691
        %v818 = vpop.f32.mrb[0].mxu0
        %v819 = vadd.f32 0.0, %v818
        %v820 = vpop.f32.mrb[0].mxu0
        %821 = vmatprep.mubr.f32.mxu0 0.0
        %822 = vmatmul.mubr.f32.gmra.mrb[0].mxu0 %v694
        %v823 = vpop.f32.mrb[0].mxu0
        %v824 = vadd.f32 0.0, %v823
        %v825 = vpop.f32.mrb[0].mxu0
        %826 = vmatprep.mubr.f32.mxu0 0.0
        %827 = vmatmul.mubr.f32.gmra.mrb[0].mxu0 %v697
        %v828 = vpop.f32.mrb[0].mxu0
        %v829 = vadd.f32 0.0, %v828
        %v830 = vpop.f32.mrb[0].mxu0
        %831 = vmatprep.mubr.f32.mxu0 0.0
        %832 = vmatmul.mubr.f32.gmra.mrb[0].mxu0 %v700
        %v833 = vpop.f32.mrb[0].mxu0
        %v834 = vadd.f32 0.0, %v833
        %v835 = vpop.f32.mrb[0].mxu0
        %836 = vmatprep.mubr.f32.mxu0 0.0
        %837 = vmatmul.mubr.f32.gmra.mrb[0].mxu0 %v703
        %v838 = vpop.f32.mrb[0].mxu0
        %v839 = vadd.f32 0.0, %v838
        %v840 = vpop.f32.mrb[0].mxu0
        %841 = vmatprep.mubr.f32.mxu0 0.0
        %842 = vmatmul.mubr.f32.gmra.mrb[0].mxu0 %v706
        %v843 = vpop.f32.mrb[0].mxu0
        %v844 = vadd.f32 0.0, %v843
        %v845 = vpop.f32.mrb[0].mxu0
        %846 = vmatprep.mubr.f32.mxu0 0.0
        %847 = vmatmul.mubr.f32.gmra.mrb[0].mxu0 %v709
        %v848 = vpop.f32.mrb[0].mxu0
        %v849 = vadd.f32 0.0, %v848
        %v850 = vpop.f32.mrb[0].mxu0
        %851 = vmatprep.mubr.f32.mxu0 0.0
        %852 = vmatmul.mubr.f32.gmra.mrb[0].mxu0 %v712
        %v853 = vpop.f32.mrb[0].mxu0
        %v854 = vadd.f32 0.0, %v853
        %v855 = vpop.f32.mrb[0].mxu0
        %856 = vmatprep.mubr.f32.mxu0 0.0
        %857 = vmatmul.mubr.f32.gmra.mrb[0].mxu0 %v715
        %v858 = vpop.f32.mrb[0].mxu0
        %v859 = vadd.f32 0.0, %v858
        %v860 = vpop.f32.mrb[0].mxu0
        %861 = vdwg.mxu0
        %863 = vset.pattern.permute.xlu0 0
        %864 = vperm.xlu0 %863, %v545
        %v865 = vpop.permute.xlu0 %864
        %868 = vset.pattern.permute.xlu0 0
        %869 = vperm.xlu0 %868, %v546
        %v870 = vpop.permute.xlu0 %869
        %873 = vset.pattern.permute.xlu0 0
        %874 = vperm.xlu0 %873, %v547
        %v875 = vpop.permute.xlu0 %874
        %878 = vset.pattern.permute.xlu0 0
        %879 = vperm.xlu0 %878, %v548
        %v880 = vpop.permute.xlu0 %879
        %883 = vset.pattern.permute.xlu0 0
        %884 = vperm.xlu0 %883, %v549
        %v885 = vpop.permute.xlu0 %884
        %888 = vset.pattern.permute.xlu0 0
        %889 = vperm.xlu0 %888, %v550
        %v890 = vpop.permute.xlu0 %889
        %893 = vset.pattern.permute.xlu0 0
        %894 = vperm.xlu0 %893, %v551
        %v895 = vpop.permute.xlu0 %894
        %898 = vset.pattern.permute.xlu0 0
        %899 = vperm.xlu0 %898, %v552
        %v900 = vpop.permute.xlu0 %899
        %903 = vset.pattern.permute.xlu0 0
        %904 = vperm.xlu0 %903, %v553
        %v905 = vpop.permute.xlu0 %904
        %908 = vset.pattern.permute.xlu0 0
        %909 = vperm.xlu0 %908, %v554
        %v910 = vpop.permute.xlu0 %909
        %913 = vset.pattern.permute.xlu0 0
        %914 = vperm.xlu0 %913, %v555
        %v915 = vpop.permute.xlu0 %914
        %918 = vset.pattern.permute.xlu0 0
        %919 = vperm.xlu0 %918, %v556
        %v920 = vpop.permute.xlu0 %919
        %923 = vset.pattern.permute.xlu0 0
        %924 = vperm.xlu0 %923, %v557
        %v925 = vpop.permute.xlu0 %924
        %928 = vset.pattern.permute.xlu0 0
        %929 = vperm.xlu0 %928, %v558
        %v930 = vpop.permute.xlu0 %929
        %933 = vset.pattern.permute.xlu0 0
        %934 = vperm.xlu0 %933, %v559
        %v935 = vpop.permute.xlu0 %934
        %938 = vset.pattern.permute.xlu0 0
        %939 = vperm.xlu0 %938, %v560
        %v940 = vpop.permute.xlu0 %939
        %v942 = vmul.f32 %v865, %v784
        %v943 = vmul.f32 %v870, %v789
        %v944 = vmul.f32 %v875, %v794
        %v945 = vmul.f32 %v880, %v799
        %v946 = vmul.f32 %v885, %v804
        %v947 = vmul.f32 %v890, %v809
        %v948 = vmul.f32 %v895, %v814
        %v949 = vmul.f32 %v900, %v819
        %v950 = vmul.f32 %v905, %v824
        %v951 = vmul.f32 %v910, %v829
        %v952 = vmul.f32 %v915, %v834
        %v953 = vmul.f32 %v920, %v839
        %v954 = vmul.f32 %v925, %v844
        %v955 = vmul.f32 %v930, %v849
        %v956 = vmul.f32 %v935, %v854
        %v957 = vmul.f32 %v940, %v859
        %v958 = vlaneseq
        %v959 = vshrl.u32 %v958, 7
        %v960 = vadd.s32 %v959, 8
        %v961 = vadd.s32 %v959, 16
        %v962 = vadd.s32 %v959, 24
        %v963 = vadd.s32 %v959, 32
        %v964 = vadd.s32 %v959, 40
        %v965 = vadd.s32 %v959, 48
        %v966 = vadd.s32 %v959, 56
        %v967 = vlaneseq
        %v968 = vshrl.u32 %v967, 7
        %v969 = vsub.s32 0, %v968
        %v970 = vrot.slane %v561, %v969
        %vm971 = vcmp.eq.s32.totalorder %v959, %v970
        %vm972 = vcmp.eq.s32.totalorder %v960, %v970
        %vm973 = vcmp.eq.s32.totalorder %v961, %v970
        %vm974 = vcmp.eq.s32.totalorder %v962, %v970
        %vm975 = vcmp.eq.s32.totalorder %v963, %v970
        %vm976 = vcmp.eq.s32.totalorder %v964, %v970
        %vm977 = vcmp.eq.s32.totalorder %v965, %v970
        %vm978 = vcmp.eq.s32.totalorder %v966, %v970
        %v979 = vsel %vm971, 1, 0
        %v980 = vsel %vm972, 1, 0
        %v981 = vsel %vm973, 1, 0
        %v982 = vsel %vm974, 1, 0
        %v983 = vsel %vm975, 1, 0
        %v984 = vsel %vm976, 1, 0
        %v985 = vsel %vm977, 1, 0
        %v986 = vsel %vm978, 1, 0
        %v987 = vcvt.s32.f32 %v979
        %v988 = vcvt.s32.f32 %v980
        %v989 = vcvt.s32.f32 %v981
        %v990 = vcvt.s32.f32 %v982
        %v991 = vcvt.s32.f32 %v983
        %v992 = vcvt.s32.f32 %v984
        %v993 = vcvt.s32.f32 %v985
        %v994 = vcvt.s32.f32 %v986
        %v995 = vld [vmem:[#allocation3] sm:$0xff]
        %v996 = vld [vmem:[#allocation3 + $0x8] sm:$0xff]
        %v997 = vld [vmem:[#allocation3 + $0x10] sm:$0xff]
        %v998 = vld [vmem:[#allocation3 + $0x18] sm:$0xff]
        %v999 = vld [vmem:[#allocation3 + $0x20] sm:$0xff]
        %v1000 = vld [vmem:[#allocation3 + $0x28] sm:$0xff]
        %v1001 = vld [vmem:[#allocation3 + $0x30] sm:$0xff]
        %v1002 = vld [vmem:[#allocation3 + $0x38] sm:$0xff]
        %1003 = vmatprep.subr.mxu0 0.0
        %1004 = vmatpush1.msra.mxu0 %v942
        %1005 = vmatprep.subr.mxu0 0.0
        %1006 = vmatpush1.msra.mxu0 %v943
        %1007 = vmatprep.subr.mxu0 0.0
        %1008 = vmatpush1.msra.mxu0 %v944
        %1009 = vmatprep.subr.mxu0 0.0
        %1010 = vmatpush1.msra.mxu0 %v945
        %1011 = vmatprep.subr.mxu0 0.0
        %1012 = vmatpush1.msra.mxu0 %v946
        %1013 = vmatprep.subr.mxu0 0.0
        %1014 = vmatpush1.msra.mxu0 %v947
        %1015 = vmatprep.subr.mxu0 0.0
        %1016 = vmatpush1.msra.mxu0 %v948
        %1017 = vmatprep.subr.mxu0 0.0
        %1018 = vmatpush1.msra.mxu0 %v949
        %1019 = vmatprep.subr.mxu0 0.0
        %1020 = vmatpush1.msra.mxu0 %v950
        %1021 = vmatprep.subr.mxu0 0.0
        %1022 = vmatpush1.msra.mxu0 %v951
        %1023 = vmatprep.subr.mxu0 0.0
        %1024 = vmatpush1.msra.mxu0 %v952
        %1025 = vmatprep.subr.mxu0 0.0
        %1026 = vmatpush1.msra.mxu0 %v953
        %1027 = vmatprep.subr.mxu0 0.0
        %1028 = vmatpush1.msra.mxu0 %v954
        %1029 = vmatprep.subr.mxu0 0.0
        %1030 = vmatpush1.msra.mxu0 %v955
        %1031 = vmatprep.subr.mxu0 0.0
        %1032 = vmatpush1.msra.mxu0 %v956
        %1033 = vmatprep.subr.mxu0 0.0
        %1034 = vmatpush1.msra.mxu0 %v957
        %1035 = vmatprep.subr.mxu0 0.0
        %1036 = vmatpush1.msra.mxu0 0.0
        %1037 = vmatprep.subr.mxu0 0.0
        %1038 = vmatpush1.msra.mxu0 0.0
        %1039 = vmatprep.subr.mxu0 0.0
        %1040 = vmatpush1.msra.mxu0 0.0
        %1041 = vmatprep.subr.mxu0 0.0
        %1042 = vmatpush1.msra.mxu0 0.0
        %1043 = vmatprep.subr.mxu0 0.0
        %1044 = vmatpush1.msra.mxu0 0.0
        %1045 = vmatprep.subr.mxu0 0.0
        %1046 = vmatpush1.msra.mxu0 0.0
        %1047 = vmatprep.subr.mxu0 0.0
        %1048 = vmatpush1.msra.mxu0 0.0
        %1049 = vmatprep.subr.mxu0 0.0
        %1050 = vmatpush1.msra.mxu0 0.0
        %1051 = vmatprep.subr.mxu0 0.0
        %1052 = vmatpush1.msra.mxu0 0.0
        %1053 = vmatprep.subr.mxu0 0.0
        %1054 = vmatpush1.msra.mxu0 0.0
        %1055 = vmatprep.subr.mxu0 0.0
        %1056 = vmatpush1.msra.mxu0 0.0
        %1057 = vmatprep.subr.mxu0 0.0
        %1058 = vmatpush1.msra.mxu0 0.0
        %1059 = vmatprep.subr.mxu0 0.0
        %1060 = vmatpush1.msra.mxu0 0.0
        %1061 = vmatprep.subr.mxu0 0.0
        %1062 = vmatpush1.msra.mxu0 0.0
        %1063 = vmatprep.subr.mxu0 0.0
        %1064 = vmatpush1.msra.mxu0 0.0
        %1065 = vmatprep.subr.mxu0 0.0
        %1066 = vmatpush1.msra.mxu0 0.0
        %1067 = vmatprep.mubr.f32.mxu0 0.0
        %1068 = vmatmul.mubr.f32.gmra.mrb[0].mxu0 %v987
        %v1069 = vpop.f32.mrb[0].mxu0
        %v1070 = vadd.f32 0.0, %v1069
        %v1071 = vpop.f32.mrb[0].mxu0
        %1072 = vmatprep.mubr.f32.mxu0 0.0
        %1073 = vmatmul.mubr.f32.gmra.mrb[0].mxu0 %v988
        %v1074 = vpop.f32.mrb[0].mxu0
        %v1075 = vadd.f32 0.0, %v1074
        %v1076 = vpop.f32.mrb[0].mxu0
        %1077 = vmatprep.mubr.f32.mxu0 0.0
        %1078 = vmatmul.mubr.f32.gmra.mrb[0].mxu0 %v989
        %v1079 = vpop.f32.mrb[0].mxu0
        %v1080 = vadd.f32 0.0, %v1079
        %v1081 = vpop.f32.mrb[0].mxu0
        %1082 = vmatprep.mubr.f32.mxu0 0.0
        %1083 = vmatmul.mubr.f32.gmra.mrb[0].mxu0 %v990
        %v1084 = vpop.f32.mrb[0].mxu0
        %v1085 = vadd.f32 0.0, %v1084
        %v1086 = vpop.f32.mrb[0].mxu0
        %1087 = vmatprep.mubr.f32.mxu0 0.0
        %1088 = vmatmul.mubr.f32.gmra.mrb[0].mxu0 %v991
        %v1089 = vpop.f32.mrb[0].mxu0
        %v1090 = vadd.f32 0.0, %v1089
        %v1091 = vpop.f32.mrb[0].mxu0
        %1092 = vmatprep.mubr.f32.mxu0 0.0
        %1093 = vmatmul.mubr.f32.gmra.mrb[0].mxu0 %v992
        %v1094 = vpop.f32.mrb[0].mxu0
        %v1095 = vadd.f32 0.0, %v1094
        %v1096 = vpop.f32.mrb[0].mxu0
        %1097 = vmatprep.mubr.f32.mxu0 0.0
        %1098 = vmatmul.mubr.f32.gmra.mrb[0].mxu0 %v993
        %v1099 = vpop.f32.mrb[0].mxu0
        %v1100 = vadd.f32 0.0, %v1099
        %v1101 = vpop.f32.mrb[0].mxu0
        %1102 = vmatprep.mubr.f32.mxu0 0.0
        %1103 = vmatmul.mubr.f32.gmra.mrb[0].mxu0 %v994
        %v1104 = vpop.f32.mrb[0].mxu0
        %v1105 = vadd.f32 0.0, %v1104
        %v1106 = vpop.f32.mrb[0].mxu0
        %1107 = vdwg.mxu0
        %v1108 = vadd.f32 %v995, %v1070
        %v1109 = vadd.f32 %v996, %v1075
        %v1110 = vadd.f32 %v997, %v1080
        %v1111 = vadd.f32 %v998, %v1085
        %v1112 = vadd.f32 %v999, %v1090
        %v1113 = vadd.f32 %v1000, %v1095
        %v1114 = vadd.f32 %v1001, %v1100
        %v1115 = vadd.f32 %v1002, %v1105
        %1116 = vst [vmem:[#allocation3] sm:$0xff] %v1108
        %1117 = vst [vmem:[#allocation3 + $0x8] sm:$0xff] %v1109
        %1118 = vst [vmem:[#allocation3 + $0x10] sm:$0xff] %v1110
        %1119 = vst [vmem:[#allocation3 + $0x18] sm:$0xff] %v1111
        %1120 = vst [vmem:[#allocation3 + $0x20] sm:$0xff] %v1112
        %1121 = vst [vmem:[#allocation3 + $0x28] sm:$0xff] %v1113
        %1122 = vst [vmem:[#allocation3 + $0x30] sm:$0xff] %v1114
        %1123 = vst [vmem:[#allocation3 + $0x38] sm:$0xff] %v1115
        %p1124 = scmp.eq.s32.totalorder %s26, 2
        // Predicated region
        $region73: #{tpu_custom_call.1} parent=43 // pred_check
          %p1125 = pneg %p1124
        $region74: #{tpu_custom_call.1} parent=43 // pred_check_branch
          %1127 = sbr.rel (%p1125) target = $region76
        $region75: #{tpu_custom_call.1} parent=43 // pred_region
          %v1128 = vld [vmem:[#allocation3] sm:$0xff]
          %v1129 = vld [vmem:[#allocation3 + $0x8] sm:$0xff]
          %v1130 = vld [vmem:[#allocation3 + $0x10] sm:$0xff]
          %v1131 = vld [vmem:[#allocation3 + $0x18] sm:$0xff]
          %v1132 = vld [vmem:[#allocation3 + $0x20] sm:$0xff]
          %v1133 = vld [vmem:[#allocation3 + $0x28] sm:$0xff]
          %v1134 = vld [vmem:[#allocation3 + $0x30] sm:$0xff]
          %v1135 = vld [vmem:[#allocation3 + $0x38] sm:$0xff]
          %v1136 = vmax.f32 %v1128, 0.0
          %v1137 = vmax.f32 %v1129, 0.0
          %v1138 = vmax.f32 %v1130, 0.0
          %v1139 = vmax.f32 %v1131, 0.0
          %v1140 = vmax.f32 %v1132, 0.0
          %v1141 = vmax.f32 %v1133, 0.0
          %v1142 = vmax.f32 %v1134, 0.0
          %v1143 = vmax.f32 %v1135, 0.0
          %1144 = vst [vmem:[#allocation15] sm:$0xff] %v1136
          %1145 = vst [vmem:[#allocation15 + $0x8] sm:$0xff] %v1137
          %1146 = vst [vmem:[#allocation15 + $0x10] sm:$0xff] %v1138
          %1147 = vst [vmem:[#allocation15 + $0x18] sm:$0xff] %v1139
          %1148 = vst [vmem:[#allocation15 + $0x20] sm:$0xff] %v1140
          %1149 = vst [vmem:[#allocation15 + $0x28] sm:$0xff] %v1141
          %1150 = vst [vmem:[#allocation15 + $0x30] sm:$0xff] %v1142
          %1151 = vst [vmem:[#allocation15 + $0x38] sm:$0xff] %v1143
        $region76: #{tpu_custom_call.1} parent=43 // pred_fallthru
          _
        // Predicated region
        $region77: #{tpu_custom_call.1} parent=43 // pred_check
          %p1152 = pneg %p180
        $region78: #{tpu_custom_call.1} parent=43 // pred_check_branch
          %1154 = sbr.rel (%p1152) target = $region80
        $region79: #{tpu_custom_call.1} parent=43 // pred_region
          %s1156 = ssub.s32 1024, 1024
          %1157 = vsyncadd [#allocation6], %s1156
          %s1158 = sshll.u32 [#allocation15], 4
          %s1159 = int_to_ptr.vmem [resolvable:$true] %s1158
          %1164 = dma.vmem_to_hbm [thread:$0]  %s1159, 1024, %s6, [#allocation6], 128, 128, 8
        $region80: #{tpu_custom_call.1} parent=43 // pred_fallthru
          _
        // Predicated region
        $region81: #{tpu_custom_call.1} parent=43 // pred_check
          %p1165 = pneg %p180
        $region82: #{tpu_custom_call.1} parent=43 // pred_check_branch
          %1167 = sbr.rel (%p1165) target = $region84
        $region83: #{tpu_custom_call.1} parent=43 // pred_region
          %1168 = dma.done [#allocation6], 1024
        $region84: #{tpu_custom_call.1} parent=43 // pred_fallthru
          _
      $region44: #{tpu_custom_call.1} parent=5 // pred_fallthru
        _
      %p1169 = scmp.le.s32.totalorder 2, %s21
      // Predicated region
      $region85: #{tpu_custom_call.1} parent=5 // pred_check
        %p1170 = pneg %p1169
      $region86: #{tpu_custom_call.1} parent=5 // pred_check_branch
        %1172 = sbr.rel (%p1170) target = $region88
      $region87: #{tpu_custom_call.1} parent=5 // pred_region
        %s1173 = ssub.s32 %s21, 2
      $region88: #{tpu_custom_call.1} parent=5 // pred_fallthru
        _
    $region6: #{tpu_custom_call.1} parent=1 // loop_footer
      %s25 = sadd.s32 1, %s21
    $region7: #{tpu_custom_call.1} parent=1 // loop_footer_branch
      %20 = sbr.rel target = $region3
    $region8: #{tpu_custom_call.1} parent=1 // loop_exit
      _
    %1174 = vsyncpa [#allocation5], 1
    %s1175 = scalar_lea.sflag [#allocation5], 1
    %1176 = vsyncpa %s1175, 1
    %1177 = vsyncpa [#allocation8], 1
    %1178 = vsyncpa [#allocation11], 1
    %s1179 = scalar_lea.sflag [#allocation11], 1
    %1180 = vsyncpa %s1179, 1
    %1181 = vsyncpa [#allocation14], 1
    %s1182 = scalar_lea.sflag [#allocation14], 1
    %1183 = vsyncpa %s1182, 1
    %1184 = vsyncpa [#allocation6], 1
    %s1185 = scalar_lea.sflag [#allocation6], 1
    %1186 = vsyncpa %s1185, 1

</llo_original>
